<compile_context>
chip_gen: v7x
topology: tpu7x:2x2x1
jax: 0.10.0
libtpu: 0.0.40
codegen_flags: <defaults>
</compile_context>

<pallas_src>
import math

import jax
import jax.numpy as jnp
from jax.experimental import pallas as pl
from jax.experimental.pallas import tpu as pltpu


# ----------------------------------------------------------------------------- kernels
def _pool2d_kernel(x_ref, b_ref, o_ref):
    # x_ref: (rq, 2*k*W) folded row-pair block; b_ref: (2*k*W, k*W/2) pooling matrix (0.25).
    x = x_ref[...]
    if x.dtype != b_ref.dtype:
        x = x.astype(b_ref.dtype)
    y = jnp.dot(x, b_ref[...], preferred_element_type=jnp.float32)
    o_ref[...] = y.astype(o_ref.dtype)


def _pool3d_kernel(x_ref, b_ref, o_ref):
    # x_ref: (2, rh, 2*k*W) — the two d-planes of a d-pair; b_ref: (2*k*W, k*W/2) with 0.125.
    s = x_ref[0].astype(jnp.float32) + x_ref[1].astype(jnp.float32)
    if s.dtype != b_ref.dtype:
        s = s.astype(b_ref.dtype)
    y = jnp.dot(s, b_ref[...], preferred_element_type=jnp.float32)
    o_ref[...] = y.astype(o_ref.dtype)


# ----------------------------------------------------------------------------- helpers
def _fold_pool_matrix(w, k, weight, dtype):
    """(2*k*w, k*(w//2)) matrix.  Output column (p, j) averages input lane positions
    p*2w + {2j, 2j+1, w+2j, w+2j+1} with the given weight (0.25 for 2-D, 0.125 for 3-D)."""
    w2 = w // 2
    nr, nc = 2 * k * w, k * w2
    r = jax.lax.broadcasted_iota(jnp.int32, (nr, nc), 0)
    c = jax.lax.broadcasted_iota(jnp.int32, (nr, nc), 1)
    rp, ri = r // (2 * w), r % (2 * w)     # folded pair index, offset within the pair
    cp, cj = c // w2, c % w2               # folded pair index, output column
    hit = (rp == cp) & ((ri % w) // 2 == cj)
    return jnp.where(hit, jnp.float32(weight), jnp.float32(0.0)).astype(dtype)


def _pick_fold(w2, n):
    """Fold factor k (must divide n) so that k*w2 is lane-dense (>=128, ideally %128==0)."""
    if w2 >= 128:
        return 1
    k0 = 128 // math.gcd(w2, 128)          # smallest k with k*w2 % 128 == 0
    if n % k0 == 0:
        return k0
    cap = max(1, 512 // max(w2, 1))
    best = 1
    for k in range(1, min(n, cap) + 1):
        if n % k == 0:
            best = k
            if k * w2 >= 128:
                return k
    return best


def _tpu_vmem_budget():
    """(target block bytes, vmem_limit cap) — generation aware."""
    cap_bytes = 64 << 20
    try:
        info = pltpu.get_tpu_info()
        cap_bytes = int(getattr(info, "vmem_capacity_bytes", cap_bytes))
    except Exception:
        pass
    if cap_bytes >= (100 << 20):           # v5e / v6e: 128 MiB VMEM
        return 8 << 20, 96 << 20
    return 4 << 20, 44 << 20               # v7x-class: 64 MiB VMEM


def _pick_row_tile(total_rows, bytes_per_row, target_bytes):
    rq = max(8, target_bytes // max(bytes_per_row, 1))
    rq = min(rq, 16384, total_rows)
    if rq >= 8:
        rq = (rq // 8) * 8
    return max(int(rq), 1)


def _normalize_tile(rq, total_rows):
    rq = max(1, min(int(rq), total_rows))
    if 8 <= rq < total_rows:
        rq = (rq // 8) * 8
    return rq


def _vmem_limit(block_bytes, cap):
    est = int(block_bytes * 1.5) + (4 << 20)
    return int(min(max(est, 16 << 20), cap))


def _matmul_dtype(in_dtype, override):
    if override is not None:
        return jnp.dtype(override)
    d = jnp.dtype(in_dtype)
    if d == jnp.dtype(jnp.bfloat16):
        return d
    return jnp.dtype(jnp.float32)


# ----------------------------------------------------------------------------- 2-D pool
def avg_pool2d_2x(x, *, block_rows=None, matmul_dtype=None):
    """avg_pool2d(kernel_size=2, stride=2) on NCHW input, as a single-pass Pallas TPU kernel."""
    N, C, H, W = x.shape
    assert H % 2 == 0 and W % 2 == 0, "H and W must be even for 2x downsample"
    H2, W2 = H // 2, W // 2
    rows = N * C * H2
    itemsize = jnp.dtype(x.dtype).itemsize
    md = _matmul_dtype(x.dtype, matmul_dtype)

    k = _pick_fold(W2, rows)               # fold k row-pairs per lane row -> lane-dense output
    R = rows // k
    lane_in, lane_out = 2 * k * W, k * W2

    xr = x.reshape(R, lane_in)             # free, contiguous reshape: one dense DMA per block
    b = _fold_pool_matrix(W, k, 0.25, md)  # constant pooling matrix, resident in VMEM

    target, cap = _tpu_vmem_budget()
    rq = block_rows if block_rows is not None else _pick_row_tile(R, lane_in * itemsize, target)
    rq = _normalize_tile(rq, R)
    grid = (pl.cdiv(R, rq),)

    block_bytes = (2 * rq * lane_in + 2 * rq * lane_out) * itemsize
    block_bytes += 2 * lane_in * lane_out * jnp.dtype(md).itemsize
    block_bytes += 4 * rq * (lane_in + lane_out)

    out = pl.pallas_call(
        _pool2d_kernel,
        out_shape=jax.ShapeDtypeStruct((R, lane_out), x.dtype),
        grid_spec=pltpu.PrefetchScalarGridSpec(
            num_scalar_prefetch=0,
            grid=grid,
            in_specs=[
                pl.BlockSpec((rq, lane_in), lambda r: (r, 0)),
                pl.BlockSpec((lane_in, lane_out), lambda r: (0, 0)),
            ],
            out_specs=pl.BlockSpec((rq, lane_out), lambda r: (r, 0)),
        ),
        compiler_params=pltpu.CompilerParams(
            # TODO(synk): on v7x, evaluate pltpu.CORE_PARALLEL on this axis for 2-TC sharding.
            dimension_semantics=("parallel",),
            vmem_limit_bytes=_vmem_limit(block_bytes, cap),
        ),
    )(xr, b)

    return out.reshape(N, C, H2, W2)


# ----------------------------------------------------------------------------- 3-D pool (fused)
def avg_pool3d_2x(x, *, block_rows=None, matmul_dtype=None):
    """avg_pool3d(kernel_size=2, stride=2) on NCDHW input (voxelfea=True path), single pass."""
    N, C, D, H, W = x.shape
    assert D % 2 == 0 and H % 2 == 0 and W % 2 == 0
    D2, H2, W2 = D // 2, H // 2, W // 2
    itemsize = jnp.dtype(x.dtype).itemsize
    md = _matmul_dtype(x.dtype, matmul_dtype)

    k = _pick_fold(W2, H2)                 # fold must stay inside one d-plane -> divides H2
    H2k = H2 // k
    R3 = N * C * D2
    lane_in, lane_out = 2 * k * W, k * W2

    xd = x.reshape(R3, 2, H2k, lane_in)    # free reshape; d-pair is the (strided) axis of size 2
    b = _fold_pool_matrix(W, k, 0.125, md)

    target, cap = _tpu_vmem_budget()
    rh = block_rows if block_rows is not None else _pick_row_tile(H2k, 2 * lane_in * itemsize, target)
    rh = _normalize_tile(rh, H2k)
    grid = (R3, pl.cdiv(H2k, rh))

    block_bytes = (2 * (2 * rh * lane_in) + 2 * rh * lane_out) * itemsize
    block_bytes += 2 * lane_in * lane_out * jnp.dtype(md).itemsize
    block_bytes += 4 * rh * (2 * lane_in + lane_out)

    out = pl.pallas_call(
        _pool3d_kernel,
        out_shape=jax.ShapeDtypeStruct((R3, H2k, lane_out), x.dtype),
        grid_spec=pltpu.PrefetchScalarGridSpec(
            num_scalar_prefetch=0,
            grid=grid,
            in_specs=[
                pl.BlockSpec((None, 2, rh, lane_in), lambda i, j: (i, 0, j, 0)),
                pl.BlockSpec((lane_in, lane_out), lambda i, j: (0, 0)),
            ],
            out_specs=pl.BlockSpec((None, rh, lane_out), lambda i, j: (i, j, 0)),
        ),
        compiler_params=pltpu.CompilerParams(
            dimension_semantics=("parallel", "parallel"),
            vmem_limit_bytes=_vmem_limit(block_bytes, cap),
        ),
    )(xd, b)

    return out.reshape(N, C, D2, H2, W2)


# ----------------------------------------------------------------------------- module forward
def bev_plane_downsample2x(tpl_xy, *, tri_z_down=False, conv_down=False, voxelfea=False,
                           block_rows=None, matmul_dtype=None):
    """Forward pass of BeVplaneDownsample2x (tri_z_down is unused in forward, as in PyTorch)."""
    del tri_z_down
    if conv_down:
        # TODO(synk): conv_down=True path (stride-2 3x3 Conv2d/Conv3d with replicate padding and
        # learned weights) is not ported to a Pallas kernel; only the avg-pool paths are.
        raise NotImplementedError("conv_down=True is not implemented as a Pallas kernel")
    if voxelfea:
        return avg_pool3d_2x(tpl_xy, block_rows=block_rows, matmul_dtype=matmul_dtype)
    return avg_pool2d_2x(tpl_xy, block_rows=block_rows, matmul_dtype=matmul_dtype)


# ----------------------------------------------------------------------------- references
def _ref_avg_pool2d_2x(x):
    N, C, H, W = x.shape
    return x.reshape(N, C, H // 2, 2, W // 2, 2).mean(axis=(3, 5)).astype(x.dtype)


def _ref_avg_pool3d_2x(x):
    N, C, D, H, W = x.shape
    return x.reshape(N, C, D // 2, 2, H // 2, 2, W // 2, 2).mean(axis=(3, 5, 7)).astype(x.dtype)


# ----------------------------------------------------------------------------- main
if __name__ == "__main__":
    key = jax.random.PRNGKey(0)
    k1, k2, k3, k4 = jax.random.split(key, 4)

    # Default path: avg_pool2d(kernel=2, stride=2), small shape.
    x = jax.random.normal(k1, (2, 4, 16, 16), dtype=jnp.float32)
    y = jax.block_until_ready(bev_plane_downsample2x(x))
    assert y.shape == (2, 4, 8, 8)
    assert jnp.allclose(y, _ref_avg_pool2d_2x(x), atol=1e-5, rtol=1e-5), "2d pool mismatch"

    # Multi-block grid with a ragged edge block (exercises cdiv tiling + masked tail writes).
    x2 = jax.random.normal(k2, (2, 3, 32, 32), dtype=jnp.float32)
    y2 = jax.block_until_ready(avg_pool2d_2x(x2, block_rows=8))
    assert jnp.allclose(y2, _ref_avg_pool2d_2x(x2), atol=1e-5, rtol=1e-5), "tiled 2d mismatch"

    # Fast bf16-matmul option on f32 input (looser tolerance; default path stays exact-dtype).
    yf = jax.block_until_ready(avg_pool2d_2x(x2, matmul_dtype=jnp.bfloat16))
    assert jnp.allclose(yf, _ref_avg_pool2d_2x(x2), atol=2e-2, rtol=2e-2), "bf16-matmul mismatch"

    # bf16 input (matmul in bf16 with f32 accumulation; reference computed in f32).
    xb = jax.random.normal(k3, (2, 4, 32, 32), dtype=jnp.float32).astype(jnp.bfloat16)
    yb = jax.block_until_ready(avg_pool2d_2x(xb))
    yb_ref = _ref_avg_pool2d_2x(xb.astype(jnp.float32))
    assert jnp.allclose(yb.astype(jnp.float32), yb_ref, atol=5e-2, rtol=5e-2), "bf16 mismatch"

    # voxelfea path: fused single-pass avg_pool3d(kernel=2, stride=2).
    xv = jax.random.normal(k4, (2, 4, 8, 16, 16), dtype=jnp.float32)
    yv = jax.block_until_ready(bev_plane_downsample2x(xv, voxelfea=True))
    assert yv.shape == (2, 4, 4, 8, 8)
    assert jnp.allclose(yv, _ref_avg_pool3d_2x(xv), atol=1e-5, rtol=1e-5), "3d pool mismatch"

    print("KERNEL_OK")
</pallas_src>

<mosaic_0001>
module attributes {stable_mosaic.version = 11 : i64} {
  func.func @_pool2d_kernel(%arg0: i32, %arg1: memref<4x512xf32, #tpu.memory_space<vmem>>, %arg2: memref<512x128xf32, #tpu.memory_space<vmem>>, %arg3: memref<4x128xf32, #tpu.memory_space<vmem>>) attributes {dimension_semantics = [#tpu.dimension_semantics<parallel>], iteration_bounds = array<i64: 1>, scalar_prefetch = 0 : i64, scratch_operands = 0 : i64, tpu.core_type = #tpu.core_type<tc>, window_params = [{transform_indices = @transform_0, window_bounds = array<i64: 4, 512>}, {pipeline_mode = #tpu.pipeline_mode<synchronous>, transform_indices = @transform_1, window_bounds = array<i64: 512, 128>}, {transform_indices = @transform_2, window_bounds = array<i64: 4, 128>}]} {
    %c0 = arith.constant 0 : index
    %c0_0 = arith.constant 0 : index
    %0 = vector.load %arg1[%c0, %c0_0] : memref<4x512xf32, #tpu.memory_space<vmem>>, vector<4x512xf32>
    %c0_1 = arith.constant 0 : index
    %c0_2 = arith.constant 0 : index
    %1 = vector.load %arg2[%c0_1, %c0_2] : memref<512x128xf32, #tpu.memory_space<vmem>>, vector<512x128xf32>
    %cst = arith.constant dense<0.000000e+00> : vector<4x128xf32>
    %2 = tpu.matmul %0, %1, %cst {dimension_numbers = #tpu.dot_dimension_numbers<[1], [0], [0], [1], [0, 0, 1, 1], [], []>} : vector<4x512xf32>, vector<512x128xf32>, vector<4x128xf32> -> vector<4x128xf32>
    %c0_3 = arith.constant 0 : index
    %c0_4 = arith.constant 0 : index
    %3 = vector.load %arg3[%c0_3, %c0_4] : memref<4x128xf32, #tpu.memory_space<vmem>>, vector<4x128xf32>
    tpu.vector_store %arg3[%c0_3, %c0_4], %2 {strides = array<i32>} : memref<4x128xf32, #tpu.memory_space<vmem>>, vector<4x128xf32>,
    return
  }
  func.func @transform_0(%arg0: i32) -> (i32, i32) {
    %c0_i32 = arith.constant 0 : i32
    %c0_i32_0 = arith.constant 0 : i32
    return %arg0, %c0_i32 : i32, i32
  }
  func.func @transform_1(%arg0: i32) -> (i32, i32) {
    %c0_i32 = arith.constant 0 : i32
    %c0_i32_0 = arith.constant 0 : i32
    %c0_i32_1 = arith.constant 0 : i32
    return %c0_i32, %c0_i32_0 : i32, i32
  }
  func.func @transform_2(%arg0: i32) -> (i32, i32) {
    %c0_i32 = arith.constant 0 : i32
    %c0_i32_0 = arith.constant 0 : i32
    return %arg0, %c0_i32 : i32, i32
  }
}

</mosaic_0001>

<llo_original>
// kernel: tpu_custom_call.1
$region0: #{tpu_custom_call.1}
  #allocation0 [shape = 'u32[]', space=smem, size = 0x4, offset = 0x4, fixed_abs, tag = 'smem constant byte address 0x4 - core index']
  #allocation1 [shape = 'u32[144,128]{1,0:T(1,128)}', space=vmem, size = 0x12000, scoped, tag = 'internal scratch']
  %s0 = inlined_call_operand.hbm [shape: f32[4,512], index: 0, kind: input, shape index: {}]
  %s1 = inlined_call_operand.hbm [shape: f32[512,128], index: 1, kind: input, shape index: {}]
  %s2 = inlined_call_operand.hbm [shape: f32[4,128], index: 2, kind: output, shape index: {}]
  %s3 = sld [smem:[#allocation0]]
  $region26: #{tpu_custom_call.1} parent=0
    _
  %s5 = ssub.s32 1, %s3
  %s6 = scalar_select 0, %s5, %s3
  $region1: #{tpu_custom_call.1} parent=0
    #allocation2 [shape = 'u8[8192]{0}', space=vmem, size = 0x2000, scoped, tag = 'input window, operand 0, single buffered']
    #allocation3 [shape = 's32[1]{0}', space=sflag, size = 0x4, scoped, tag = 'scoped memory for tpu_custom_call.1']
    #allocation4 [shape = 's32[1]{0}', space=sflag, size = 0x4, scoped, tag = 'scoped memory for tpu_custom_call.1']
    #allocation5 [shape = 'u8[262144]{0}', space=vmem, size = 0x40000, scoped, tag = 'input window, operand 1, single buffered']
    #allocation6 [shape = 's32[1]{0}', space=sflag, size = 0x4, scoped, tag = 'scoped memory for tpu_custom_call.1']
    #allocation7 [shape = 'u8[2048]{0}', space=vmem, size = 0x800, scoped, tag = 'output window, operand 0, single buffered']
    %7 = vsyncpa [#allocation3], 0
    %8 = vsyncpa [#allocation6], 0
    %9 = vsyncpa [#allocation4], 0
    // Predicated region
    $region2: #{tpu_custom_call.1} parent=1 // pred_check
      _
    $region3: #{tpu_custom_call.1} parent=1 // pred_check_branch
      %11 = sbr.rel (0) target = $region5
    $region4: #{tpu_custom_call.1} parent=1 // pred_region
      %s13 = ssub.s32 256, 256
      %14 = vsyncadd [#allocation3], %s13
      %s16 = sshll.u32 [#allocation2], 4
      %s17 = int_to_ptr.vmem [resolvable:$true] %s16
      %19 = dma.hbm_to_vmem [thread:$0]  %s0, 256, %s17, [#allocation3]
    $region5: #{tpu_custom_call.1} parent=1 // pred_fallthru
      _
    // Predicated region
    $region6: #{tpu_custom_call.1} parent=1 // pred_check
      _
    $region7: #{tpu_custom_call.1} parent=1 // pred_check_branch
      %21 = sbr.rel (0) target = $region9
    $region8: #{tpu_custom_call.1} parent=1 // pred_region
      %s23 = ssub.s32 8192, 8192
      %24 = vsyncadd [#allocation6], %s23
      %s25 = sshll.u32 [#allocation5], 4
      %s26 = int_to_ptr.vmem [resolvable:$true] %s25
      %31 = dma.hbm_to_vmem [thread:$0]  %s1, 8192, %s26, [#allocation6], 128, 128, 8
    $region9: #{tpu_custom_call.1} parent=1 // pred_fallthru
      _
    // Predicated region
    $region10: #{tpu_custom_call.1} parent=1 // pred_check
      _
    $region11: #{tpu_custom_call.1} parent=1 // pred_check_branch
      %33 = sbr.rel (0) target = $region13
    $region12: #{tpu_custom_call.1} parent=1 // pred_region
      %34 = dma.done [#allocation3], 256
    $region13: #{tpu_custom_call.1} parent=1 // pred_fallthru
      _
    // Predicated region
    $region14: #{tpu_custom_call.1} parent=1 // pred_check
      _
    $region15: #{tpu_custom_call.1} parent=1 // pred_check_branch
      %36 = sbr.rel (0) target = $region17
    $region16: #{tpu_custom_call.1} parent=1 // pred_region
      %37 = dma.done [#allocation6], 8192
    $region17: #{tpu_custom_call.1} parent=1 // pred_fallthru
      _
    %v38 = vld [vmem:[#allocation2] sm:$0xff]
    %v39 = vld [vmem:[#allocation2 + $0x8] sm:$0xff]
    %v40 = vld [vmem:[#allocation5] sm:$0xff]
    %v41 = vld [vmem:[#allocation5 + $0x8] sm:$0xff]
    %v42 = vld [vmem:[#allocation5 + $0x10] sm:$0xff]
    %v43 = vld [vmem:[#allocation5 + $0x18] sm:$0xff]
    %v44 = vld [vmem:[#allocation5 + $0x20] sm:$0xff]
    %v45 = vld [vmem:[#allocation5 + $0x28] sm:$0xff]
    %v46 = vld [vmem:[#allocation5 + $0x30] sm:$0xff]
    %v47 = vld [vmem:[#allocation5 + $0x38] sm:$0xff]
    %v48 = vld [vmem:[#allocation5 + $0x40] sm:$0xff]
    %v49 = vld [vmem:[#allocation5 + $0x48] sm:$0xff]
    %v50 = vld [vmem:[#allocation5 + $0x50] sm:$0xff]
    %v51 = vld [vmem:[#allocation5 + $0x58] sm:$0xff]
    %v52 = vld [vmem:[#allocation5 + $0x60] sm:$0xff]
    %v53 = vld [vmem:[#allocation5 + $0x68] sm:$0xff]
    %v54 = vld [vmem:[#allocation5 + $0x70] sm:$0xff]
    %v55 = vld [vmem:[#allocation5 + $0x78] sm:$0xff]
    %v56 = vld [vmem:[#allocation5 + $0x80] sm:$0xff]
    %v57 = vld [vmem:[#allocation5 + $0x88] sm:$0xff]
    %v58 = vld [vmem:[#allocation5 + $0x90] sm:$0xff]
    %v59 = vld [vmem:[#allocation5 + $0x98] sm:$0xff]
    %v60 = vld [vmem:[#allocation5 + $0xa0] sm:$0xff]
    %v61 = vld [vmem:[#allocation5 + $0xa8] sm:$0xff]
    %v62 = vld [vmem:[#allocation5 + $0xb0] sm:$0xff]
    %v63 = vld [vmem:[#allocation5 + $0xb8] sm:$0xff]
    %v64 = vld [vmem:[#allocation5 + $0xc0] sm:$0xff]
    %v65 = vld [vmem:[#allocation5 + $0xc8] sm:$0xff]
    %v66 = vld [vmem:[#allocation5 + $0xd0] sm:$0xff]
    %v67 = vld [vmem:[#allocation5 + $0xd8] sm:$0xff]
    %v68 = vld [vmem:[#allocation5 + $0xe0] sm:$0xff]
    %v69 = vld [vmem:[#allocation5 + $0xe8] sm:$0xff]
    %v70 = vld [vmem:[#allocation5 + $0xf0] sm:$0xff]
    %v71 = vld [vmem:[#allocation5 + $0xf8] sm:$0xff]
    %v72 = vld [vmem:[#allocation5 + $0x100] sm:$0xff]
    %v73 = vld [vmem:[#allocation5 + $0x108] sm:$0xff]
    %v74 = vld [vmem:[#allocation5 + $0x110] sm:$0xff]
    %v75 = vld [vmem:[#allocation5 + $0x118] sm:$0xff]
    %v76 = vld [vmem:[#allocation5 + $0x120] sm:$0xff]
    %v77 = vld [vmem:[#allocation5 + $0x128] sm:$0xff]
    %v78 = vld [vmem:[#allocation5 + $0x130] sm:$0xff]
    %v79 = vld [vmem:[#allocation5 + $0x138] sm:$0xff]
    %v80 = vld [vmem:[#allocation5 + $0x140] sm:$0xff]
    %v81 = vld [vmem:[#allocation5 + $0x148] sm:$0xff]
    %v82 = vld [vmem:[#allocation5 + $0x150] sm:$0xff]
    %v83 = vld [vmem:[#allocation5 + $0x158] sm:$0xff]
    %v84 = vld [vmem:[#allocation5 + $0x160] sm:$0xff]
    %v85 = vld [vmem:[#allocation5 + $0x168] sm:$0xff]
    %v86 = vld [vmem:[#allocation5 + $0x170] sm:$0xff]
    %v87 = vld [vmem:[#allocation5 + $0x178] sm:$0xff]
    %v88 = vld [vmem:[#allocation5 + $0x180] sm:$0xff]
    %v89 = vld [vmem:[#allocation5 + $0x188] sm:$0xff]
    %v90 = vld [vmem:[#allocation5 + $0x190] sm:$0xff]
    %v91 = vld [vmem:[#allocation5 + $0x198] sm:$0xff]
    %v92 = vld [vmem:[#allocation5 + $0x1a0] sm:$0xff]
    %v93 = vld [vmem:[#allocation5 + $0x1a8] sm:$0xff]
    %v94 = vld [vmem:[#allocation5 + $0x1b0] sm:$0xff]
    %v95 = vld [vmem:[#allocation5 + $0x1b8] sm:$0xff]
    %v96 = vld [vmem:[#allocation5 + $0x1c0] sm:$0xff]
    %v97 = vld [vmem:[#allocation5 + $0x1c8] sm:$0xff]
    %v98 = vld [vmem:[#allocation5 + $0x1d0] sm:$0xff]
    %v99 = vld [vmem:[#allocation5 + $0x1d8] sm:$0xff]
    %v100 = vld [vmem:[#allocation5 + $0x1e0] sm:$0xff]
    %v101 = vld [vmem:[#allocation5 + $0x1e8] sm:$0xff]
    %v102 = vld [vmem:[#allocation5 + $0x1f0] sm:$0xff]
    %v103 = vld [vmem:[#allocation5 + $0x1f8] sm:$0xff]
    %v106 = vcombine.high %v38, %v38
    %v107 = vcombine.high %v39, %v39
    %110 = vmatprep.subr.mxu0 0.0
    %111 = vmatpush1.msra.mxu0 %v40
    %112 = vmatprep.subr.mxu0 0.0
    %113 = vmatpush1.msra.mxu0 %v41
    %114 = vmatprep.subr.mxu0 0.0
    %115 = vmatpush1.msra.mxu0 %v42
    %116 = vmatprep.subr.mxu0 0.0
    %117 = vmatpush1.msra.mxu0 %v43
    %118 = vmatprep.subr.mxu0 0.0
    %119 = vmatpush1.msra.mxu0 %v44
    %120 = vmatprep.subr.mxu0 0.0
    %121 = vmatpush1.msra.mxu0 %v45
    %122 = vmatprep.subr.mxu0 0.0
    %123 = vmatpush1.msra.mxu0 %v46
    %124 = vmatprep.subr.mxu0 0.0
    %125 = vmatpush1.msra.mxu0 %v47
    %126 = vmatprep.subr.mxu0 0.0
    %127 = vmatpush1.msra.mxu0 %v48
    %128 = vmatprep.subr.mxu0 0.0
    %129 = vmatpush1.msra.mxu0 %v49
    %130 = vmatprep.subr.mxu0 0.0
    %131 = vmatpush1.msra.mxu0 %v50
    %132 = vmatprep.subr.mxu0 0.0
    %133 = vmatpush1.msra.mxu0 %v51
    %134 = vmatprep.subr.mxu0 0.0
    %135 = vmatpush1.msra.mxu0 %v52
    %136 = vmatprep.subr.mxu0 0.0
    %137 = vmatpush1.msra.mxu0 %v53
    %138 = vmatprep.subr.mxu0 0.0
    %139 = vmatpush1.msra.mxu0 %v54
    %140 = vmatprep.subr.mxu0 0.0
    %141 = vmatpush1.msra.mxu0 %v55
    %142 = vmatprep.subr.mxu0 0.0
    %143 = vmatpush1.msra.mxu0 %v56
    %144 = vmatprep.subr.mxu0 0.0
    %145 = vmatpush1.msra.mxu0 %v57
    %146 = vmatprep.subr.mxu0 0.0
    %147 = vmatpush1.msra.mxu0 %v58
    %148 = vmatprep.subr.mxu0 0.0
    %149 = vmatpush1.msra.mxu0 %v59
    %150 = vmatprep.subr.mxu0 0.0
    %151 = vmatpush1.msra.mxu0 %v60
    %152 = vmatprep.subr.mxu0 0.0
    %153 = vmatpush1.msra.mxu0 %v61
    %154 = vmatprep.subr.mxu0 0.0
    %155 = vmatpush1.msra.mxu0 %v62
    %156 = vmatprep.subr.mxu0 0.0
    %157 = vmatpush1.msra.mxu0 %v63
    %158 = vmatprep.subr.mxu0 0.0
    %159 = vmatpush1.msra.mxu0 %v64
    %160 = vmatprep.subr.mxu0 0.0
    %161 = vmatpush1.msra.mxu0 %v65
    %162 = vmatprep.subr.mxu0 0.0
    %163 = vmatpush1.msra.mxu0 %v66
    %164 = vmatprep.subr.mxu0 0.0
    %165 = vmatpush1.msra.mxu0 %v67
    %166 = vmatprep.subr.mxu0 0.0
    %167 = vmatpush1.msra.mxu0 %v68
    %168 = vmatprep.subr.mxu0 0.0
    %169 = vmatpush1.msra.mxu0 %v69
    %170 = vmatprep.subr.mxu0 0.0
    %171 = vmatpush1.msra.mxu0 %v70
    %172 = vmatprep.subr.mxu0 0.0
    %173 = vmatpush1.msra.mxu0 %v71
    %174 = vmatprep.mubr.f32.mxu0 %v106
    %175 = vmatmul.mubr.f32.gmra.mrb[0].mxu0 %v38
    %v176 = vpop.f32.mrb[0].mxu0
    %v177 = vadd.f32 0.0, %v176
    %v178 = vpop.f32.mrb[0].mxu0
    %179 = vdwg.mxu0
    %180 = vmatprep.subr.mxu0 0.0
    %181 = vmatpush1.msra.mxu0 %v72
    %182 = vmatprep.subr.mxu0 0.0
    %183 = vmatpush1.msra.mxu0 %v73
    %184 = vmatprep.subr.mxu0 0.0
    %185 = vmatpush1.msra.mxu0 %v74
    %186 = vmatprep.subr.mxu0 0.0
    %187 = vmatpush1.msra.mxu0 %v75
    %188 = vmatprep.subr.mxu0 0.0
    %189 = vmatpush1.msra.mxu0 %v76
    %190 = vmatprep.subr.mxu0 0.0
    %191 = vmatpush1.msra.mxu0 %v77
    %192 = vmatprep.subr.mxu0 0.0
    %193 = vmatpush1.msra.mxu0 %v78
    %194 = vmatprep.subr.mxu0 0.0
    %195 = vmatpush1.msra.mxu0 %v79
    %196 = vmatprep.subr.mxu0 0.0
    %197 = vmatpush1.msra.mxu0 %v80
    %198 = vmatprep.subr.mxu0 0.0
    %199 = vmatpush1.msra.mxu0 %v81
    %200 = vmatprep.subr.mxu0 0.0
    %201 = vmatpush1.msra.mxu0 %v82
    %202 = vmatprep.subr.mxu0 0.0
    %203 = vmatpush1.msra.mxu0 %v83
    %204 = vmatprep.subr.mxu0 0.0
    %205 = vmatpush1.msra.mxu0 %v84
    %206 = vmatprep.subr.mxu0 0.0
    %207 = vmatpush1.msra.mxu0 %v85
    %208 = vmatprep.subr.mxu0 0.0
    %209 = vmatpush1.msra.mxu0 %v86
    %210 = vmatprep.subr.mxu0 0.0
    %211 = vmatpush1.msra.mxu0 %v87
    %212 = vmatprep.subr.mxu0 0.0
    %213 = vmatpush1.msra.mxu0 %v88
    %214 = vmatprep.subr.mxu0 0.0
    %215 = vmatpush1.msra.mxu0 %v89
    %216 = vmatprep.subr.mxu0 0.0
    %217 = vmatpush1.msra.mxu0 %v90
    %218 = vmatprep.subr.mxu0 0.0
    %219 = vmatpush1.msra.mxu0 %v91
    %220 = vmatprep.subr.mxu0 0.0
    %221 = vmatpush1.msra.mxu0 %v92
    %222 = vmatprep.subr.mxu0 0.0
    %223 = vmatpush1.msra.mxu0 %v93
    %224 = vmatprep.subr.mxu0 0.0
    %225 = vmatpush1.msra.mxu0 %v94
    %226 = vmatprep.subr.mxu0 0.0
    %227 = vmatpush1.msra.mxu0 %v95
    %228 = vmatprep.subr.mxu0 0.0
    %229 = vmatpush1.msra.mxu0 %v96
    %230 = vmatprep.subr.mxu0 0.0
    %231 = vmatpush1.msra.mxu0 %v97
    %232 = vmatprep.subr.mxu0 0.0
    %233 = vmatpush1.msra.mxu0 %v98
    %234 = vmatprep.subr.mxu0 0.0
    %235 = vmatpush1.msra.mxu0 %v99
    %236 = vmatprep.subr.mxu0 0.0
    %237 = vmatpush1.msra.mxu0 %v100
    %238 = vmatprep.subr.mxu0 0.0
    %239 = vmatpush1.msra.mxu0 %v101
    %240 = vmatprep.subr.mxu0 0.0
    %241 = vmatpush1.msra.mxu0 %v102
    %242 = vmatprep.subr.mxu0 0.0
    %243 = vmatpush1.msra.mxu0 %v103
    %244 = vmatprep.mubr.f32.mxu0 %v107
    %245 = vmatmul.mubr.f32.gmra.mrb[0].mxu0 %v39
    %v246 = vpop.f32.mrb[0].mxu0
    %v247 = vadd.f32 %v177, %v246
    %v248 = vpop.f32.mrb[0].mxu0
    %249 = vdwg.mxu0
    %250 = vst [vmem:[#allocation7] sm:$0xf] %v247
    // Predicated region
    $region18: #{tpu_custom_call.1} parent=1 // pred_check
      _
    $region19: #{tpu_custom_call.1} parent=1 // pred_check_branch
      %252 = sbr.rel (0) target = $region21
    $region20: #{tpu_custom_call.1} parent=1 // pred_region
      %s254 = ssub.s32 64, 64
      %255 = vsyncadd [#allocation4], %s254
      %s257 = sshll.u32 [#allocation7], 4
      %s258 = int_to_ptr.vmem [resolvable:$true] %s257
      %260 = dma.vmem_to_hbm [thread:$0]  %s258, 64, %s2, [#allocation4]
    $region21: #{tpu_custom_call.1} parent=1 // pred_fallthru
      _
    // Predicated region
    $region22: #{tpu_custom_call.1} parent=1 // pred_check
      _
    $region23: #{tpu_custom_call.1} parent=1 // pred_check_branch
      %262 = sbr.rel (0) target = $region25
    $region24: #{tpu_custom_call.1} parent=1 // pred_region
      %263 = dma.done [#allocation4], 64
    $region25: #{tpu_custom_call.1} parent=1 // pred_fallthru
      _
    %264 = vsyncpa [#allocation3], 1
    %265 = vsyncpa [#allocation6], 1
    %266 = vsyncpa [#allocation4], 1

</llo_original>
